<compile_context>
chip_gen: v6e
topology: v6e:2x2x1
jax: 0.10.0
libtpu: 0.0.40
codegen_flags: <defaults>
</compile_context>

<pallas_src>
import functools

import jax
import jax.numpy as jnp
from jax.experimental import pallas as pl
from jax.experimental.pallas import tpu as pltpu


_LANE = 128                         # lane width (last-dim tiling unit)
_SUBLANE = {4: 8, 2: 16, 1: 32}     # native sublane count by itemsize


def _round_up(x, m):
    return (x + m - 1) // m * m


def _pick_feature_tile(cp, target):
    """Largest multiple of 128 dividing cp that is <= target (cp itself if small)."""
    if cp <= target:
        return cp
    for t in range(target, _LANE - 1, -_LANE):
        if cp % t == 0:
            return t
    return _LANE   # cp is a multiple of 128, so 128 always divides


# --------------------------- fused single-tile path ---------------------------
def _rezero_fused_kernel(alpha_ref, x_ref, wt_ref, b_ref, o_ref, *, mm_dtype):
    # alpha_ref: (1,)          f32 scalar in SMEM
    # x_ref:     (tile_n, cp)  x slab (native dtype), reused for matmul + residual
    # wt_ref:    (cp, cp)      W^T (native or compute dtype), VMEM-resident
    # b_ref:     (1, cp)       bias, f32
    # o_ref:     (tile_n, cp)  output
    x = x_ref[...]
    xm = x if mm_dtype is None else x.astype(mm_dtype)        # cheap VPU cast
    h = jnp.dot(xm, wt_ref[...], preferred_element_type=jnp.float32)
    h = jnp.maximum(h + b_ref[...], 0.0)                      # bias + ReLU (f32)
    out = x.astype(jnp.float32) + alpha_ref[0] * h            # residual + ReZero
    o_ref[...] = out.astype(o_ref.dtype)


# ------------------------ general tiled-reduction path ------------------------
def _rezero_tiled_kernel(alpha_ref, xk_ref, wt_ref, b_ref, xres_ref, o_ref, acc_ref):
    # alpha_ref: (1,)               f32 scalar in SMEM
    # xk_ref:    (tile_n, tile_k)   x slab feeding the MXU (native/compute dtype)
    # wt_ref:    (tile_k, tile_co)  W^T slab
    # b_ref:     (1, tile_co)       bias, f32
    # xres_ref:  (tile_n, tile_co)  x slab for the residual add (native dtype)
    # o_ref:     (tile_n, tile_co)  output
    # acc_ref:   (tile_n, tile_co)  f32 accumulator, persists across the K axis
    k = pl.program_id(2)

    @pl.when(k == 0)
    def _():
        acc_ref[...] = jnp.zeros_like(acc_ref)

    acc_ref[...] += jnp.dot(xk_ref[...], wt_ref[...],
                            preferred_element_type=jnp.float32)

    @pl.when(k == pl.num_programs(2) - 1)
    def _():
        h = jnp.maximum(acc_ref[...] + b_ref[...], 0.0)              # bias + ReLU
        out = xres_ref[...].astype(jnp.float32) + alpha_ref[0] * h   # residual + ReZero
        o_ref[...] = out.astype(o_ref.dtype)


def rezero_linear_block(x, w, b, alpha, *,
                        compute_dtype=None,
                        feature_tile_target=512,
                        vmem_budget_bytes=40 * (1 << 20)):
    """out = x + alpha * relu(x @ w.T + b).

    x: (N, C); w: (C, C) in PyTorch Linear layout (out_features, in_features);
    b: (C,); alpha: scalar.  Returns (N, C) in x.dtype.

    compute_dtype: optional dtype (e.g. jnp.bfloat16) for the matmul operands;
      the residual / epilogue stays in f32.
    """
    N, C = x.shape
    out_dtype = x.dtype

    # --- lane-dense feature dim: pad C up to a multiple of 128 -----------------
    cp = max(_LANE, _round_up(C, _LANE))
    pad_c = cp - C

    wt = jnp.transpose(w)                      # (C, C): x @ W.T == x @ wt
    if pad_c:
        x = jnp.pad(x, ((0, 0), (0, pad_c)))
        wt = jnp.pad(wt, ((0, pad_c), (0, pad_c)))
        b = jnp.pad(b, ((0, pad_c),))
    b2 = b.astype(jnp.float32).reshape(1, cp)
    alpha_arr = jnp.asarray(alpha, jnp.float32).reshape(1)

    mm_dtype = None if compute_dtype is None else jnp.dtype(compute_dtype)
    wt_mm = wt if mm_dtype is None else wt.astype(mm_dtype)

    xb = jnp.dtype(x.dtype).itemsize
    ob = jnp.dtype(out_dtype).itemsize
    wb = jnp.dtype(wt_mm.dtype).itemsize
    sublane = max(_SUBLANE.get(xb, 8), _SUBLANE.get(ob, 8))

    # ===================== FUSED path: single feature tile =====================
    if cp <= feature_tile_target:
        fixed = 2 * cp * cp * wb + 2 * cp * 4                 # W^T + bias buffers
        per_row = 2 * cp * xb + 2 * cp * ob                   # x + out, double-buffered
        rows_cap = _round_up(N, sublane)
        rows_budget = max(sublane, (vmem_budget_bytes - fixed) // per_row)
        tile_n = min(1024, rows_budget, rows_cap)
        tile_n = max(sublane, (tile_n // sublane) * sublane)

        n_pad = _round_up(N, tile_n)
        if n_pad != N:
            x = jnp.pad(x, ((0, n_pad - N), (0, 0)))

        need = fixed + tile_n * per_row
        vmem_limit = int(min(max(need * 5 // 4, 32 * (1 << 20)), 56 * (1 << 20)))

        kernel = functools.partial(_rezero_fused_kernel, mm_dtype=mm_dtype)
        out_padded = pl.pallas_call(
            kernel,
            out_shape=jax.ShapeDtypeStruct((n_pad, cp), out_dtype),
            grid_spec=pltpu.PrefetchScalarGridSpec(
                num_scalar_prefetch=0,
                grid=(n_pad // tile_n,),
                in_specs=[
                    pl.BlockSpec(memory_space=pltpu.SMEM),              # alpha
                    pl.BlockSpec((tile_n, cp), lambda i: (i, 0)),       # x
                    pl.BlockSpec((cp, cp), lambda i: (0, 0)),           # W^T (resident)
                    pl.BlockSpec((1, cp), lambda i: (0, 0)),            # bias (resident)
                ],
                out_specs=pl.BlockSpec((tile_n, cp), lambda i: (i, 0)),
            ),
            compiler_params=pltpu.CompilerParams(
                dimension_semantics=("parallel",),
                vmem_limit_bytes=vmem_limit,
            ),
        )(alpha_arr, x, wt_mm, b2)
        return out_padded[:N, :C]

    # ===================== TILED path: (rows, co, K) grid ======================
    tile_co = _pick_feature_tile(cp, feature_tile_target)
    tile_k = _pick_feature_tile(cp, feature_tile_target)

    x_res = x                                                    # residual (native)
    x_mm = x if mm_dtype is None else x.astype(mm_dtype)
    xmb = jnp.dtype(x_mm.dtype).itemsize
    sublane = max(sublane, _SUBLANE.get(xmb, 8))

    fixed = 2 * tile_k * tile_co * wb + 2 * tile_co * 4           # W^T + bias buffers
    per_row = (2 * tile_k * xmb            # x (matmul), double-buffered
               + 2 * tile_co * xb          # x (residual)
               + 2 * tile_co * ob          # output
               + tile_co * 4)              # f32 accumulator (single buffer)
    rows_cap = _round_up(N, sublane)
    rows_budget = max(sublane, (vmem_budget_bytes - fixed) // per_row)
    tile_n = min(1024, rows_budget, rows_cap)
    tile_n = max(sublane, (tile_n // sublane) * sublane)

    n_pad = _round_up(N, tile_n)
    if n_pad != N:
        x_mm = jnp.pad(x_mm, ((0, n_pad - N), (0, 0)))
        x_res = jnp.pad(x_res, ((0, n_pad - N), (0, 0)))

    grid = (n_pad // tile_n, cp // tile_co, cp // tile_k)

    need = fixed + tile_n * per_row
    vmem_limit = int(min(max(need * 5 // 4, 32 * (1 << 20)), 56 * (1 << 20)))

    out_padded = pl.pallas_call(
        _rezero_tiled_kernel,
        out_shape=jax.ShapeDtypeStruct((n_pad, cp), out_dtype),
        grid_spec=pltpu.PrefetchScalarGridSpec(
            num_scalar_prefetch=0,
            grid=grid,
            in_specs=[
                pl.BlockSpec(memory_space=pltpu.SMEM),                    # alpha
                pl.BlockSpec((tile_n, tile_k), lambda i, j, k: (i, k)),   # x (matmul)
                pl.BlockSpec((tile_k, tile_co), lambda i, j, k: (k, j)),  # W^T
                pl.BlockSpec((1, tile_co), lambda i, j, k: (0, j)),       # bias
                pl.BlockSpec((tile_n, tile_co), lambda i, j, k: (i, j)),  # x (residual)
            ],
            out_specs=pl.BlockSpec((tile_n, tile_co), lambda i, j, k: (i, j)),
            scratch_shapes=[pltpu.VMEM((tile_n, tile_co), jnp.float32)],
        ),
        compiler_params=pltpu.CompilerParams(
            dimension_semantics=("parallel", "parallel", "arbitrary"),
            vmem_limit_bytes=vmem_limit,
        ),
    )(alpha_arr, x_mm, wt_mm, b2, x_res)

    return out_padded[:N, :C]


if __name__ == "__main__":
    key = jax.random.PRNGKey(0)
    kx, kw, kb, kx2, kw2, kb2 = jax.random.split(key, 6)

    def ref_fn(xx, ww, bb, aa):
        return xx + aa * jnp.maximum(xx @ ww.T + bb, 0.0)

    # Small shapes consistent with the module: batch of 8 vectors, c = 32.
    N, C = 8, 32
    x = jax.random.normal(kx, (N, C), jnp.float32)
    bound = 1.0 / (C ** 0.5)
    w = jax.random.uniform(kw, (C, C), jnp.float32, -bound, bound)
    b = jax.random.uniform(kb, (C,), jnp.float32, -bound, bound)

    # ReZero init (alpha = 0) and a nonzero alpha -> fused path.
    for a in (0.0, 0.7):
        out = jax.block_until_ready(rezero_linear_block(x, w, b, jnp.float32(a)))
        assert out.shape == (N, C)
        assert jnp.allclose(out, ref_fn(x, w, b, a), atol=1e-5), f"mismatch alpha={a}"

    # Ragged batch (exercises the row-padding path).
    x13 = jax.random.normal(kx, (13, C), jnp.float32)
    out13 = jax.block_until_ready(rezero_linear_block(x13, w, b, jnp.float32(0.7)))
    assert jnp.allclose(out13, ref_fn(x13, w, b, 0.7), atol=1e-5), "mismatch ragged N"

    # bf16 matmul-operand path (f32 residual/epilogue) — looser tolerance by design.
    outbf = jax.block_until_ready(
        rezero_linear_block(x, w, b, jnp.float32(0.7), compute_dtype=jnp.bfloat16))
    assert jnp.allclose(outbf, ref_fn(x, w, b, 0.7), atol=1e-1), "mismatch bf16 path"

    # Force the general tiled (rows, co, K) path with a small feature tile.
    N2, C2 = 16, 256
    x2 = jax.random.normal(kx2, (N2, C2), jnp.float32)
    bound2 = 1.0 / (C2 ** 0.5)
    w2 = jax.random.uniform(kw2, (C2, C2), jnp.float32, -bound2, bound2)
    b2 = jax.random.uniform(kb2, (C2,), jnp.float32, -bound2, bound2)
    out2 = jax.block_until_ready(
        rezero_linear_block(x2, w2, b2, jnp.float32(0.7), feature_tile_target=128))
    assert jnp.allclose(out2, ref_fn(x2, w2, b2, 0.7), atol=1e-4), "mismatch tiled path"

    print("KERNEL_OK")
</pallas_src>

<mosaic_0001>
module attributes {stable_mosaic.version = 11 : i64} {
  func.func @_rezero_fused_kernel(%arg0: i32, %arg1: memref<1xf32, #tpu.memory_space<smem>>, %arg2: memref<8x128xf32, #tpu.memory_space<vmem>>, %arg3: memref<128x128xf32, #tpu.memory_space<vmem>>, %arg4: memref<1x128xf32, #tpu.memory_space<vmem>>, %arg5: memref<8x128xf32, #tpu.memory_space<vmem>>) attributes {dimension_semantics = [#tpu.dimension_semantics<parallel>], iteration_bounds = array<i64: 1>, scalar_prefetch = 0 : i64, scratch_operands = 0 : i64, tpu.core_type = #tpu.core_type<tc>, window_params = [{transform_indices = @transform_0, window_bounds = array<i64: 1>}, {transform_indices = @transform_1, window_bounds = array<i64: 8, 128>}, {pipeline_mode = #tpu.pipeline_mode<synchronous>, transform_indices = @transform_2, window_bounds = array<i64: 128, 128>}, {pipeline_mode = #tpu.pipeline_mode<synchronous>, transform_indices = @transform_3, window_bounds = array<i64: 1, 128>}, {transform_indices = @transform_4, window_bounds = array<i64: 8, 128>}]} {
    %c0 = arith.constant 0 : index
    %c0_0 = arith.constant 0 : index
    %0 = vector.load %arg2[%c0, %c0_0] : memref<8x128xf32, #tpu.memory_space<vmem>>, vector<8x128xf32>
    %c0_1 = arith.constant 0 : index
    %c0_2 = arith.constant 0 : index
    %1 = vector.load %arg3[%c0_1, %c0_2] : memref<128x128xf32, #tpu.memory_space<vmem>>, vector<128x128xf32>
    %cst = arith.constant dense<0.000000e+00> : vector<8x128xf32>
    %2 = tpu.matmul %0, %1, %cst {dimension_numbers = #tpu.dot_dimension_numbers<[1], [0], [0], [1], [0, 0, 1, 1], [], []>} : vector<8x128xf32>, vector<128x128xf32>, vector<8x128xf32> -> vector<8x128xf32>
    %c0_3 = arith.constant 0 : index
    %c0_4 = arith.constant 0 : index
    %3 = vector.load %arg4[%c0_3, %c0_4] : memref<1x128xf32, #tpu.memory_space<vmem>>, vector<1x128xf32>
    %4 = vector.broadcast %3 : vector<1x128xf32> to vector<8x128xf32>
    %5 = arith.addf %2, %4 : vector<8x128xf32>
    %cst_5 = arith.constant 0.000000e+00 : f32
    %6 = vector.broadcast %cst_5 : f32 to vector<8x128xf32>
    %7 = arith.maximumf %5, %6 : vector<8x128xf32>
    %c0_6 = arith.constant 0 : index
    %8 = memref.load %arg1[%c0_6] : memref<1xf32, #tpu.memory_space<smem>>
    %9 = vector.broadcast %8 : f32 to vector<8x128xf32>
    %10 = arith.mulf %9, %7 : vector<8x128xf32>
    %11 = arith.addf %0, %10 : vector<8x128xf32>
    %c0_7 = arith.constant 0 : index
    %c0_8 = arith.constant 0 : index
    %12 = vector.load %arg5[%c0_7, %c0_8] : memref<8x128xf32, #tpu.memory_space<vmem>>, vector<8x128xf32>
    tpu.vector_store %arg5[%c0_7, %c0_8], %11 {strides = array<i32>} : memref<8x128xf32, #tpu.memory_space<vmem>>, vector<8x128xf32>,
    return
  }
  func.func @transform_0(%arg0: i32) -> i32 {
    %c0_i32 = arith.constant 0 : i32
    %c0_i32_0 = arith.constant 0 : i32
    return %c0_i32 : i32
  }
  func.func @transform_1(%arg0: i32) -> (i32, i32) {
    %c0_i32 = arith.constant 0 : i32
    %c0_i32_0 = arith.constant 0 : i32
    return %arg0, %c0_i32 : i32, i32
  }
  func.func @transform_2(%arg0: i32) -> (i32, i32) {
    %c0_i32 = arith.constant 0 : i32
    %c0_i32_0 = arith.constant 0 : i32
    %c0_i32_1 = arith.constant 0 : i32
    return %c0_i32, %c0_i32_0 : i32, i32
  }
  func.func @transform_3(%arg0: i32) -> (i32, i32) {
    %c0_i32 = arith.constant 0 : i32
    %c0_i32_0 = arith.constant 0 : i32
    %c0_i32_1 = arith.constant 0 : i32
    return %c0_i32, %c0_i32_0 : i32, i32
  }
  func.func @transform_4(%arg0: i32) -> (i32, i32) {
    %c0_i32 = arith.constant 0 : i32
    %c0_i32_0 = arith.constant 0 : i32
    return %arg0, %c0_i32 : i32, i32
  }
}

</mosaic_0001>

<llo_original>
// kernel: tpu_custom_call.1
$region0: #{tpu_custom_call.1}
  #allocation0 [shape = 'u32[]', space=smem, size = 0x4, offset = 0x4, fixed_abs, tag = 'smem constant byte address 0x4 - core index']
  #allocation1 [shape = 'u32[144,128]{1,0:T(1,128)}', space=vmem, size = 0x12000, scoped, tag = 'internal scratch']
  #allocation2 [shape = 'f32[1]{0:T(128)S(6)}', space=smem, size = 0x200, scoped, tag = 'scoped memory for tpu_custom_call.1']
  %s0 = inlined_call_operand.<no memory space> [shape: f32[1], index: 0, kind: input, shape index: {}]
  %s1 = inlined_call_operand.hbm [shape: f32[8,128], index: 1, kind: input, shape index: {}]
  %s2 = inlined_call_operand.hbm [shape: f32[128,128], index: 2, kind: input, shape index: {}]
  %s3 = inlined_call_operand.vmem [shape: f32[1,128], index: 3, kind: input, shape index: {}]
  %s4 = inlined_call_operand.hbm [shape: f32[8,128], index: 4, kind: output, shape index: {}]
  %s5 = sld [smem:[#allocation0]]
  $region34: #{tpu_custom_call.1} parent=0
    _
  %s7 = ssub.s32 1, %s5
  %s8 = scalar_select 0, %s7, %s5
  %9 = sst [smem:[#allocation2]] %s0
  $region1: #{tpu_custom_call.1} parent=0
    #allocation3 [shape = 'u8[4096]{0}', space=vmem, size = 0x1000, scoped, tag = 'input window, operand 1, single buffered']
    #allocation4 [shape = 's32[1]{0}', space=sflag, size = 0x4, scoped, tag = 'scoped memory for tpu_custom_call.1']
    #allocation5 [shape = 's32[1]{0}', space=sflag, size = 0x4, scoped, tag = 'scoped memory for tpu_custom_call.1']
    #allocation6 [shape = 'u8[65536]{0}', space=vmem, size = 0x10000, scoped, tag = 'input window, operand 2, single buffered']
    #allocation7 [shape = 's32[1]{0}', space=sflag, size = 0x4, scoped, tag = 'scoped memory for tpu_custom_call.1']
    #allocation8 [shape = 'u8[4096]{0}', space=vmem, size = 0x1000, scoped, tag = 'output window, operand 0, single buffered']
    %10 = vsyncpa [#allocation4], 0
    %11 = vsyncpa [#allocation7], 0
    %12 = vsyncpa [#allocation5], 0
    // Predicated region
    $region2: #{tpu_custom_call.1} parent=1 // pred_check
      _
    $region3: #{tpu_custom_call.1} parent=1 // pred_check_branch
      %14 = sbr.rel (0) target = $region5
    $region4: #{tpu_custom_call.1} parent=1 // pred_region
      _
    $region5: #{tpu_custom_call.1} parent=1 // pred_fallthru
      _
    // Predicated region
    $region6: #{tpu_custom_call.1} parent=1 // pred_check
      _
    $region7: #{tpu_custom_call.1} parent=1 // pred_check_branch
      %16 = sbr.rel (0) target = $region9
    $region8: #{tpu_custom_call.1} parent=1 // pred_region
      %s18 = ssub.s32 128, 128
      %19 = vsyncadd [#allocation4], %s18
      %s21 = sshll.u32 [#allocation3], 4
      %s22 = int_to_ptr.vmem [resolvable:$true] %s21
      %24 = dma.hbm_to_vmem [thread:$0]  %s1, 128, %s22, [#allocation4]
    $region9: #{tpu_custom_call.1} parent=1 // pred_fallthru
      _
    // Predicated region
    $region10: #{tpu_custom_call.1} parent=1 // pred_check
      _
    $region11: #{tpu_custom_call.1} parent=1 // pred_check_branch
      %26 = sbr.rel (0) target = $region13
    $region12: #{tpu_custom_call.1} parent=1 // pred_region
      %s28 = ssub.s32 2048, 2048
      %29 = vsyncadd [#allocation7], %s28
      %s30 = sshll.u32 [#allocation6], 4
      %s31 = int_to_ptr.vmem [resolvable:$true] %s30
      %36 = dma.hbm_to_vmem [thread:$0]  %s2, 2048, %s31, [#allocation7], 128, 128, 8
    $region13: #{tpu_custom_call.1} parent=1 // pred_fallthru
      _
    // Predicated region
    $region14: #{tpu_custom_call.1} parent=1 // pred_check
      _
    $region15: #{tpu_custom_call.1} parent=1 // pred_check_branch
      %38 = sbr.rel (0) target = $region17
    $region16: #{tpu_custom_call.1} parent=1 // pred_region
      _
    $region17: #{tpu_custom_call.1} parent=1 // pred_fallthru
      _
    // Predicated region
    $region18: #{tpu_custom_call.1} parent=1 // pred_check
      _
    $region19: #{tpu_custom_call.1} parent=1 // pred_check_branch
      %40 = sbr.rel (0) target = $region21
    $region20: #{tpu_custom_call.1} parent=1 // pred_region
      %41 = dma.done [#allocation4], 128
    $region21: #{tpu_custom_call.1} parent=1 // pred_fallthru
      _
    // Predicated region
    $region22: #{tpu_custom_call.1} parent=1 // pred_check
      _
    $region23: #{tpu_custom_call.1} parent=1 // pred_check_branch
      %43 = sbr.rel (0) target = $region25
    $region24: #{tpu_custom_call.1} parent=1 // pred_region
      %44 = dma.done [#allocation7], 2048
    $region25: #{tpu_custom_call.1} parent=1 // pred_fallthru
      _
    %v45 = vld [vmem:[#allocation3] sm:$0xff]
    %v46 = vld [vmem:[#allocation6] sm:$0xff]
    %v47 = vld [vmem:[#allocation6 + $0x8] sm:$0xff]
    %v48 = vld [vmem:[#allocation6 + $0x10] sm:$0xff]
    %v49 = vld [vmem:[#allocation6 + $0x18] sm:$0xff]
    %v50 = vld [vmem:[#allocation6 + $0x20] sm:$0xff]
    %v51 = vld [vmem:[#allocation6 + $0x28] sm:$0xff]
    %v52 = vld [vmem:[#allocation6 + $0x30] sm:$0xff]
    %v53 = vld [vmem:[#allocation6 + $0x38] sm:$0xff]
    %v54 = vld [vmem:[#allocation6 + $0x40] sm:$0xff]
    %v55 = vld [vmem:[#allocation6 + $0x48] sm:$0xff]
    %v56 = vld [vmem:[#allocation6 + $0x50] sm:$0xff]
    %v57 = vld [vmem:[#allocation6 + $0x58] sm:$0xff]
    %v58 = vld [vmem:[#allocation6 + $0x60] sm:$0xff]
    %v59 = vld [vmem:[#allocation6 + $0x68] sm:$0xff]
    %v60 = vld [vmem:[#allocation6 + $0x70] sm:$0xff]
    %v61 = vld [vmem:[#allocation6 + $0x78] sm:$0xff]
    %v62 = vld [vmem:[%s3] sm:$0x1]
    %v64 = vlaneseq
    %v65 = vshrl.u32 %v64, 7
    %v66 = vsub.s32 0, %v65
    %v67 = vrot.slane %v62, %v66
    %69 = vmatprep.subr.mxu0 0.0
    %70 = vmatpush1.msra.mxu0 %v61
    %71 = vmatprep.subr.mxu0 0.0
    %72 = vmatpush1.msra.mxu0 %v60
    %73 = vmatprep.subr.mxu0 0.0
    %74 = vmatpush1.msra.mxu0 %v59
    %75 = vmatprep.subr.mxu0 0.0
    %76 = vmatpush1.msra.mxu0 %v58
    %77 = vmatprep.subr.mxu0 0.0
    %78 = vmatpush1.msra.mxu0 %v57
    %79 = vmatprep.subr.mxu0 0.0
    %80 = vmatpush1.msra.mxu0 %v56
    %81 = vmatprep.subr.mxu0 0.0
    %82 = vmatpush1.msra.mxu0 %v55
    %83 = vmatprep.subr.mxu0 0.0
    %84 = vmatpush1.msra.mxu0 %v54
    %85 = vmatprep.subr.mxu0 0.0
    %86 = vmatpush1.msra.mxu0 %v53
    %87 = vmatprep.subr.mxu0 0.0
    %88 = vmatpush1.msra.mxu0 %v52
    %89 = vmatprep.subr.mxu0 0.0
    %90 = vmatpush1.msra.mxu0 %v51
    %91 = vmatprep.subr.mxu0 0.0
    %92 = vmatpush1.msra.mxu0 %v50
    %93 = vmatprep.subr.mxu0 0.0
    %94 = vmatpush1.msra.mxu0 %v49
    %95 = vmatprep.subr.mxu0 0.0
    %96 = vmatpush1.msra.mxu0 %v48
    %97 = vmatprep.subr.mxu0 0.0
    %98 = vmatpush1.msra.mxu0 %v47
    %99 = vmatprep.subr.mxu0 0.0
    %100 = vmatpush1.msra.mxu0 %v46
    %101 = vmatprep.subr.mxu0 0.0
    %102 = vmatpush2.msra.mxu0 0.0
    %103 = vmatprep.subr.mxu0 0.0
    %104 = vmatpush2.msra.mxu0 0.0
    %105 = vmatprep.subr.mxu0 0.0
    %106 = vmatpush2.msra.mxu0 0.0
    %107 = vmatprep.subr.mxu0 0.0
    %108 = vmatpush2.msra.mxu0 0.0
    %109 = vmatprep.subr.mxu0 0.0
    %110 = vmatpush2.msra.mxu0 0.0
    %111 = vmatprep.subr.mxu0 0.0
    %112 = vmatpush2.msra.mxu0 0.0
    %113 = vmatprep.subr.mxu0 0.0
    %114 = vmatpush2.msra.mxu0 0.0
    %115 = vmatprep.subr.mxu0 0.0
    %116 = vmatpush2.msra.mxu0 0.0
    %117 = vmatprep.subr.mxu0 0.0
    %118 = vmatpush2.msra.mxu0 0.0
    %119 = vmatprep.subr.mxu0 0.0
    %120 = vmatpush2.msra.mxu0 0.0
    %121 = vmatprep.subr.mxu0 0.0
    %122 = vmatpush2.msra.mxu0 0.0
    %123 = vmatprep.subr.mxu0 0.0
    %124 = vmatpush2.msra.mxu0 0.0
    %125 = vmatprep.subr.mxu0 0.0
    %126 = vmatpush2.msra.mxu0 0.0
    %127 = vmatprep.subr.mxu0 0.0
    %128 = vmatpush2.msra.mxu0 0.0
    %129 = vmatprep.subr.mxu0 0.0
    %130 = vmatpush2.msra.mxu0 0.0
    %131 = vmatprep.subr.mxu0 0.0
    %132 = vmatpush2.msra.mxu0 0.0
    %133 = vmatprep.mubr.f32.mxu0 0.0
    %134 = vmatmul.mubr.f32.gmra.mxu0 %v45
    %v135 = vpop.f32.mrf.mxu0
    %v136 = vadd.f32 %v67, %v135
    %v137 = vpop.f32.mrf.mxu0
    %138 = vdwg.mxu0
    %v139 = vmax.f32 %v136, 0.0
    %s140 = sld [smem:[#allocation2]]
    %v141 = vstv %s140
    %v142 = vmul.f32 %v141, %v139
    %v143 = vadd.f32 %v45, %v142
    %144 = vst [vmem:[#allocation8] sm:$0xff] %v143
    // Predicated region
    $region26: #{tpu_custom_call.1} parent=1 // pred_check
      _
    $region27: #{tpu_custom_call.1} parent=1 // pred_check_branch
      %146 = sbr.rel (0) target = $region29
    $region28: #{tpu_custom_call.1} parent=1 // pred_region
      %s148 = ssub.s32 128, 128
      %149 = vsyncadd [#allocation5], %s148
      %s151 = sshll.u32 [#allocation8], 4
      %s152 = int_to_ptr.vmem [resolvable:$true] %s151
      %154 = dma.vmem_to_hbm [thread:$0]  %s152, 128, %s4, [#allocation5]
    $region29: #{tpu_custom_call.1} parent=1 // pred_fallthru
      _
    // Predicated region
    $region30: #{tpu_custom_call.1} parent=1 // pred_check
      _
    $region31: #{tpu_custom_call.1} parent=1 // pred_check_branch
      %156 = sbr.rel (0) target = $region33
    $region32: #{tpu_custom_call.1} parent=1 // pred_region
      %157 = dma.done [#allocation5], 128
    $region33: #{tpu_custom_call.1} parent=1 // pred_fallthru
      _
    %158 = vsyncpa [#allocation4], 1
    %159 = vsyncpa [#allocation7], 1
    %160 = vsyncpa [#allocation5], 1

</llo_original>
